<compile_context>
chip_gen: v7x
topology: tpu7x:2x2x1
jax: 0.10.0
libtpu: 0.0.40
codegen_flags: <defaults>
</compile_context>

<pallas_src>
import functools

import jax
import jax.numpy as jnp
from jax import lax
from jax.experimental import pallas as pl
from jax.experimental.pallas import tpu as pltpu

# Native MXU input dtype (review item).  Set to jnp.float32 to recover ~1e-6
# agreement with the f32 reference (and tighten the test tolerance).
MXU_DTYPE = jnp.bfloat16


def _round_up(x, m):
    return ((x + m - 1) // m) * m


# ----------------------------------------------------------------------------
# Kernel
# ----------------------------------------------------------------------------
def _a2_kernel(x_ref, w_ref, b_ref, z_ref, q_ref, *, C, K, CB):
    """x_ref: (1, C, Bt*N)   w_ref: (C, WTOT) [MXU_DTYPE]   b_ref: (1, WTOT) f32
       z_ref: (Bt, C, KP)    q_ref: (Bt, N, KP)      (KP = K padded to 128)."""
    Bt, _, KP = z_ref.shape
    N = q_ref.shape[1]

    def mm(a, b, dims):
        # All MXU contractions take MXU_DTYPE operands with f32 accumulation.
        return lax.dot_general(a.astype(MXU_DTYPE), b.astype(MXU_DTYPE),
                               (dims, ((), ())),
                               preferred_element_type=jnp.float32)

    # Fused 1x1 conv (+ folded BN) for all four branches AND all Bt batches in
    # one MXU contraction over channels: (C, Bt*N) x (C, WTOT) -> (Bt*N, WTOT).
    y = mm(x_ref[0], w_ref[...], ((0,), (0,)))
    y = jnp.maximum(y + b_ref[...], 0.0)          # bias + ReLU, hoisted (once)
    y = y.reshape(Bt, N, -1)                      # free split of the major dim

    # Hoisted (1, KP) 0/1 row mask for the K-softmax padding lanes.
    kmask = (lax.broadcasted_iota(jnp.int32, (1, KP), 1) < K).astype(jnp.float32)

    for b in range(Bt):        # Bt <= 4 (capped in wrapper): bounded live ranges
        yb = y[b]                                  # (N, WTOT)
        # 128-lane-aligned branch slices (no lane-offset relayouts).
        theta = yb[:, 0:C]                         # (N, C)
        rou = yb[:, CB:CB + C]                     # (N, C)
        val = yb[:, 2 * CB:2 * CB + C]             # (N, C)
        phi = yb[:, 3 * CB:3 * CB + KP]            # (N, KP); lanes >= K are 0

        # theta: softmax over the spatial axis N (torch softmax(dim=-1) on (C,N)).
        t = jnp.exp(theta - jnp.max(theta, axis=0, keepdims=True))
        theta_sm = t * pl.reciprocal(jnp.sum(t, axis=0, keepdims=True), approx=True)

        # rou: softmax over the channel axis C.
        r = jnp.exp(rou - jnp.max(rou, axis=1, keepdims=True))
        rou_sm = r * pl.reciprocal(jnp.sum(r, axis=1, keepdims=True), approx=True)

        # discrib^T[c,k] = sum_n theta_sm[n,c] * phi[n,k]           -> (C, KP)
        # (built already transposed so the Q matmul below is a plain
        #  (N,C)@(C,KP) contraction -- no transposed-RHS XLU relayout).
        discrib_t = mm(theta_sm, phi, ((0,), (0,)))
        # Q[n,k] = sum_c rou_sm[n,c] * discrib^T[c,k]               -> (N, KP)
        q = mm(rou_sm, discrib_t, ((1,), (0,)))

        # F.normalize(Q, p=2, dim=1): L2 over N per column k (eps = 1e-12).
        q = q * lax.rsqrt(jnp.maximum(jnp.sum(q * q, axis=0, keepdims=True), 1e-24))

        # Softmax over K.  The row max may include padded zero lanes; this is
        # valid only because q >= 0 here (all inputs are nonnegative).  Padded
        # lanes are removed from numerator and denominator via kmask.
        qe = jnp.exp(q - jnp.max(q, axis=1, keepdims=True)) * kmask
        q = qe * pl.reciprocal(jnp.sum(qe, axis=1, keepdims=True), approx=True)

        # Z[c,k] = sum_n val[n,c] * q[n,k] / sum_n q[n,k]           -> (C, KP)
        z = mm(val, q, ((0,), (0,)))
        qsum = jnp.sum(q, axis=0, keepdims=True)                    # (1, KP)
        z = z * pl.reciprocal(jnp.maximum(qsum, 1e-12), approx=True)
        # F.normalize(Z, p=2, dim=1): L2 over C per column k.
        z = z * lax.rsqrt(jnp.maximum(jnp.sum(z * z, axis=0, keepdims=True), 1e-24))

        z_ref[b] = z
        q_ref[b] = q


# ----------------------------------------------------------------------------
# Wrapper: BN folding, weight packing, batching, pallas_call
# ----------------------------------------------------------------------------
def _fold_and_pack(params, C, K):
    """Fold the BN scale into the 1x1-conv weights and pack the four branches,
    each in its own 128-lane-aligned block:
      [theta | pad][rou | pad][value | pad][phi (K real) | pad]."""
    CB = _round_up(C, 128)
    KP = _round_up(max(K, 1), 128)
    WTOT = 3 * CB + KP
    w = jnp.zeros((C, WTOT), jnp.float32)
    b = jnp.zeros((1, WTOT), jnp.float32)
    w = w.at[:, 0:C].set(params["wth"] * params["sth"])
    w = w.at[:, CB:CB + C].set(params["wro"] * params["sro"])
    w = w.at[:, 2 * CB:2 * CB + C].set(params["wva"] * params["sva"])
    w = w.at[:, 3 * CB:3 * CB + K].set(params["wphi"] * params["sphi"])
    b = b.at[:, 0:C].set(params["bth"])
    b = b.at[:, CB:CB + C].set(params["bro"])
    b = b.at[:, 2 * CB:2 * CB + C].set(params["bva"])
    b = b.at[:, 3 * CB:3 * CB + K].set(params["bphi"])
    return w, b, CB, KP, WTOT


def _pick_block_b(B, max_bt=4):
    """block_b <= B//2 so the grid has >= 2 steps whenever B >= 2 (both v7x
    TensorCores participate); cap at 4 to bound per-iteration live ranges on
    the single-TC v5e/v6e while still amortizing the ~0.35us step overhead."""
    if B <= 1:
        return 1
    cap = min(max_bt, max(1, B // 2))
    for d in range(cap, 0, -1):
        if B % d == 0:
            return d
    return 1


def a2_projection_pallas(x_nchw, params):
    B, C, H, W = x_nchw.shape
    N = H * W
    K = params["wphi"].shape[1]

    w_cat, b_cat, CB, KP, WTOT = _fold_and_pack(params, C, K)
    w_cat = w_cat.astype(MXU_DTYPE)

    block_b = _pick_block_b(B)
    Bg = B // block_b

    # Group block_b batches along the lane axis so the in-kernel conv is ONE
    # (block_b*N, WTOT) matmul.  For block_b == 1 the transpose moves only a
    # size-1 axis (free); otherwise it's a tiny one-off XLA relayout in HBM.
    x_g = (x_nchw.reshape(B, C, N).astype(MXU_DTYPE)
           .reshape(Bg, block_b, C, N).transpose(0, 2, 1, 3)
           .reshape(Bg, C, block_b * N))

    kernel = functools.partial(_a2_kernel, C=C, K=K, CB=CB)

    fn = pl.pallas_call(
        kernel,
        grid=(Bg,),
        in_specs=[
            pl.BlockSpec((1, C, block_b * N), lambda g: (g, 0, 0)),  # grouped x
            pl.BlockSpec((C, WTOT), lambda g: (0, 0)),               # fused weight
            pl.BlockSpec((1, WTOT), lambda g: (0, 0)),               # fused bias
        ],
        out_specs=(
            pl.BlockSpec((block_b, C, KP), lambda g: (g, 0, 0)),     # Z (K padded)
            pl.BlockSpec((block_b, N, KP), lambda g: (g, 0, 0)),     # Q (K padded)
        ),
        out_shape=(
            jax.ShapeDtypeStruct((B, C, KP), jnp.float32),
            jax.ShapeDtypeStruct((B, N, KP), jnp.float32),
        ),
        compiler_params=pltpu.CompilerParams(
            dimension_semantics=("parallel",)),   # v7x: 2 TCs split >= 2 grid steps
    )
    z_pad, q_pad = fn(x_g, w_cat, b_cat)
    # Drop the lane padding (kernel-side stores stay 128-lane dense).
    return z_pad[..., :K], q_pad[..., :K]


# ----------------------------------------------------------------------------
# Deterministic parameter construction (1x1 conv weights + folded BN affine).
# ----------------------------------------------------------------------------
def make_params(C, K, key):
    kphi, kth, kro, kva = jax.random.split(key, 4)

    def conv_w(k, cin, cout):
        # (cin, cout) so the kernel can contract over the input-channel axis.
        return (jax.random.normal(k, (cin, cout), jnp.float32)
                / jnp.sqrt(jnp.float32(cin)))

    def bn_fold(cout, off):
        i = jnp.arange(cout, dtype=jnp.float32)
        gamma = 1.0 + 0.05 * i / cout
        beta = 0.01 * (i - cout / 2.0) / cout
        running_mean = 0.02 * jnp.sin(i + off)
        running_var = 1.0 + 0.1 * jnp.cos(i + off) ** 2
        scale = gamma / jnp.sqrt(running_var + 1e-5)
        bias = beta - running_mean * scale
        return scale.reshape(1, cout), bias.reshape(1, cout)

    sphi, bphi = bn_fold(K, 0.0)
    sth, bth = bn_fold(C, 1.0)
    sro, bro = bn_fold(C, 2.0)
    sva, bva = bn_fold(C, 3.0)
    return {
        "wphi": conv_w(kphi, C, K), "sphi": sphi, "bphi": bphi,
        "wth": conv_w(kth, C, C), "sth": sth, "bth": bth,
        "wro": conv_w(kro, C, C), "sro": sro, "bro": bro,
        "wva": conv_w(kva, C, C), "sva": sva, "bva": bva,
    }


# ----------------------------------------------------------------------------
# Pure-JAX f32 reference mirroring the PyTorch forward (for correctness check).
# ----------------------------------------------------------------------------
def a2_projection_ref(x_nchw, p):
    B, C, H, W = x_nchw.shape
    N = H * W
    x = x_nchw.reshape(B, C, N).astype(jnp.float32)   # (B, C, N)

    def branch(w, s, b):
        y = jnp.einsum("bcn,ck->bkn", x, w)
        y = y * s.reshape(1, -1, 1) + b.reshape(1, -1, 1)
        return jnp.maximum(y, 0.0)

    x_phi = branch(p["wphi"], p["sphi"], p["bphi"])    # (B, K, N)
    x_theta = branch(p["wth"], p["sth"], p["bth"])     # (B, C, N)
    x_rou = branch(p["wro"], p["sro"], p["bro"])       # (B, C, N)
    x_val = branch(p["wva"], p["sva"], p["bva"])       # (B, C, N)

    x_theta = jax.nn.softmax(x_theta, axis=-1).transpose(0, 2, 1)      # (B, N, C)
    discrib = jnp.einsum("bkn,bnc->bkc", x_phi, x_theta)               # (B, K, C)
    x_rou = jax.nn.softmax(x_rou.transpose(0, 2, 1), axis=-1).transpose(0, 2, 1)
    Q = jnp.einsum("bkc,bcn->bkn", discrib, x_rou).transpose(0, 2, 1)  # (B, N, K)
    Q = Q / jnp.maximum(jnp.sqrt(jnp.sum(Q * Q, axis=1, keepdims=True)), 1e-12)
    Q = jax.nn.softmax(Q, axis=-1)
    Z = jnp.einsum("bnk,bcn->bck", Q, x_val) / jnp.sum(Q, axis=1)[:, None, :]
    Z = Z / jnp.maximum(jnp.sqrt(jnp.sum(Z * Z, axis=1, keepdims=True)), 1e-12)
    return Z, Q


if __name__ == "__main__":
    B, C, H, W = 2, 32, 8, 8     # small shapes consistent with the module
    K = 8

    key_x, key_p = jax.random.split(jax.random.PRNGKey(0))
    x = jax.random.normal(key_x, (B, C, H, W), jnp.float32)
    params = make_params(C, K, key_p)

    Z, Q = a2_projection_pallas(x, params)
    jax.block_until_ready((Z, Q))

    Z_ref, Q_ref = a2_projection_ref(x, params)
    assert Z.shape == (B, C, K) and Q.shape == (B, H * W, K)
    # bf16 MXU operands (f32 accumulation) vs. the f32 reference: relax the
    # tolerance; with MXU_DTYPE = jnp.float32 the 2e-3 bound holds.
    tol = 2e-2 if MXU_DTYPE == jnp.bfloat16 else 2e-3
    assert jnp.allclose(Z, Z_ref, atol=tol, rtol=tol), \
        float(jnp.max(jnp.abs(Z - Z_ref)))
    assert jnp.allclose(Q, Q_ref, atol=tol, rtol=tol), \
        float(jnp.max(jnp.abs(Q - Q_ref)))

    print("KERNEL_OK")
</pallas_src>

<mosaic_0001>
module attributes {stable_mosaic.version = 11 : i64} {
  func.func @_a2_kernel(%arg0: i32, %arg1: memref<1x32x64xbf16, #tpu.memory_space<vmem>>, %arg2: memref<32x512xbf16, #tpu.memory_space<vmem>>, %arg3: memref<1x512xf32, #tpu.memory_space<vmem>>, %arg4: memref<1x32x128xf32, #tpu.memory_space<vmem>>, %arg5: memref<1x64x128xf32, #tpu.memory_space<vmem>>) attributes {dimension_semantics = [#tpu.dimension_semantics<parallel>], iteration_bounds = array<i64: 2>, scalar_prefetch = 0 : i64, scratch_operands = 0 : i64, tpu.core_type = #tpu.core_type<tc>, window_params = [{transform_indices = @transform_0, window_bounds = array<i64: 1, 32, 64>}, {pipeline_mode = #tpu.pipeline_mode<synchronous>, transform_indices = @transform_1, window_bounds = array<i64: 32, 512>}, {pipeline_mode = #tpu.pipeline_mode<synchronous>, transform_indices = @transform_2, window_bounds = array<i64: 1, 512>}, {transform_indices = @transform_3, window_bounds = array<i64: 1, 32, 128>}, {transform_indices = @transform_4, window_bounds = array<i64: 1, 64, 128>}]} {
    %c0 = arith.constant 0 : index
    %c0_0 = arith.constant 0 : index
    %c0_1 = arith.constant 0 : index
    %0 = vector.load %arg1[%c0, %c0_0, %c0_1] : memref<1x32x64xbf16, #tpu.memory_space<vmem>>, vector<1x32x64xbf16>
    %1 = vector.shape_cast %0 : vector<1x32x64xbf16> to vector<32x64xbf16>
    %c0_2 = arith.constant 0 : index
    %c0_3 = arith.constant 0 : index
    %2 = vector.load %arg2[%c0_2, %c0_3] : memref<32x512xbf16, #tpu.memory_space<vmem>>, vector<32x512xbf16>
    %cst = arith.constant dense<0.000000e+00> : vector<64x512xf32>
    %3 = tpu.matmul %1, %2, %cst {dimension_numbers = #tpu.dot_dimension_numbers<[0], [0], [1], [1], [0, 1, 1, 1], [], []>} : vector<32x64xbf16>, vector<32x512xbf16>, vector<64x512xf32> -> vector<64x512xf32>
    %c0_4 = arith.constant 0 : index
    %c0_5 = arith.constant 0 : index
    %4 = vector.load %arg3[%c0_4, %c0_5] : memref<1x512xf32, #tpu.memory_space<vmem>>, vector<1x512xf32>
    %5 = vector.broadcast %4 : vector<1x512xf32> to vector<64x512xf32>
    %6 = arith.addf %3, %5 : vector<64x512xf32>
    %cst_6 = arith.constant 0.000000e+00 : f32
    %7 = vector.broadcast %cst_6 : f32 to vector<64x512xf32>
    %8 = arith.maximumf %6, %7 : vector<64x512xf32>
    %9 = vector.shape_cast %8 : vector<64x512xf32> to vector<1x64x512xf32>
    %10 = tpu.iota {dimensions = array<i32: 1>} : vector<1x128xi32>
    %c8_i32 = arith.constant 8 : i32
    %11 = vector.broadcast %c8_i32 : i32 to vector<1x128xi32>
    %12 = arith.cmpi slt, %10, %11 : vector<1x128xi32>
    %13 = arith.extui %12 : vector<1x128xi1> to vector<1x128xi32>
    %14 = arith.sitofp %13 : vector<1x128xi32> to vector<1x128xf32>
    %15 = vector.shape_cast %9 : vector<1x64x512xf32> to vector<64x512xf32>
    %16 = vector.extract_strided_slice %15 {offsets = [0, 0], sizes = [64, 32], strides = [1, 1]} : vector<64x512xf32> to vector<64x32xf32>
    %17 = vector.extract_strided_slice %15 {offsets = [0, 128], sizes = [64, 32], strides = [1, 1]} : vector<64x512xf32> to vector<64x32xf32>
    %18 = vector.extract_strided_slice %15 {offsets = [0, 256], sizes = [64, 32], strides = [1, 1]} : vector<64x512xf32> to vector<64x32xf32>
    %19 = vector.extract_strided_slice %15 {offsets = [0, 384], sizes = [64, 128], strides = [1, 1]} : vector<64x512xf32> to vector<64x128xf32>
    %cst_7 = arith.constant dense<0xFF800000> : vector<32xf32>
    %20 = vector.multi_reduction <maximumf>, %16, %cst_7 [0] : vector<64x32xf32> to vector<32xf32>
    %21 = vector.shape_cast %20 : vector<32xf32> to vector<1x32xf32>
    %22 = vector.broadcast %21 : vector<1x32xf32> to vector<64x32xf32>
    %23 = arith.subf %16, %22 : vector<64x32xf32>
    %24 = math.exp %23 : vector<64x32xf32>
    %cst_8 = arith.constant dense<0.000000e+00> : vector<32xf32>
    %25 = vector.multi_reduction <add>, %24, %cst_8 [0] : vector<64x32xf32> to vector<32xf32>
    %26 = vector.shape_cast %25 : vector<32xf32> to vector<1x32xf32>
    %27 = tpu.reciprocal %26 {approx = true} : vector<1x32xf32> -> vector<1x32xf32>
    %28 = vector.broadcast %27 : vector<1x32xf32> to vector<64x32xf32>
    %29 = arith.mulf %24, %28 : vector<64x32xf32>
    %cst_9 = arith.constant dense<0xFF800000> : vector<64xf32>
    %30 = vector.multi_reduction <maximumf>, %17, %cst_9 [1] : vector<64x32xf32> to vector<64xf32>
    %31 = vector.shape_cast %30 : vector<64xf32> to vector<64x1xf32>
    %32 = vector.broadcast %31 : vector<64x1xf32> to vector<64x32xf32>
    %33 = arith.subf %17, %32 : vector<64x32xf32>
    %34 = math.exp %33 : vector<64x32xf32>
    %cst_10 = arith.constant dense<0.000000e+00> : vector<64xf32>
    %35 = vector.multi_reduction <add>, %34, %cst_10 [1] : vector<64x32xf32> to vector<64xf32>
    %36 = vector.shape_cast %35 : vector<64xf32> to vector<64x1xf32>
    %37 = tpu.reciprocal %36 {approx = true} : vector<64x1xf32> -> vector<64x1xf32>
    %38 = vector.broadcast %37 : vector<64x1xf32> to vector<64x32xf32>
    %39 = arith.mulf %34, %38 : vector<64x32xf32>
    %40 = arith.truncf %29 : vector<64x32xf32> to vector<64x32xbf16>
    %41 = arith.truncf %19 : vector<64x128xf32> to vector<64x128xbf16>
    %cst_11 = arith.constant dense<0.000000e+00> : vector<32x128xf32>
    %42 = tpu.matmul %40, %41, %cst_11 {dimension_numbers = #tpu.dot_dimension_numbers<[0], [0], [1], [1], [0, 1, 1, 1], [], []>} : vector<64x32xbf16>, vector<64x128xbf16>, vector<32x128xf32> -> vector<32x128xf32>
    %43 = arith.truncf %39 : vector<64x32xf32> to vector<64x32xbf16>
    %44 = arith.truncf %42 : vector<32x128xf32> to vector<32x128xbf16>
    %cst_12 = arith.constant dense<0.000000e+00> : vector<64x128xf32>
    %45 = tpu.matmul %43, %44, %cst_12 {dimension_numbers = #tpu.dot_dimension_numbers<[1], [0], [0], [1], [0, 0, 1, 1], [], []>} : vector<64x32xbf16>, vector<32x128xbf16>, vector<64x128xf32> -> vector<64x128xf32>
    %46 = arith.mulf %45, %45 : vector<64x128xf32>
    %cst_13 = arith.constant dense<0.000000e+00> : vector<128xf32>
    %47 = vector.multi_reduction <add>, %46, %cst_13 [0] : vector<64x128xf32> to vector<128xf32>
    %48 = vector.shape_cast %47 : vector<128xf32> to vector<1x128xf32>
    %cst_14 = arith.constant 1.000000e-24 : f32
    %49 = vector.broadcast %cst_14 : f32 to vector<1x128xf32>
    %50 = arith.maximumf %48, %49 : vector<1x128xf32>
    %51 = math.rsqrt %50 : vector<1x128xf32>
    %52 = vector.broadcast %51 : vector<1x128xf32> to vector<64x128xf32>
    %53 = arith.mulf %45, %52 : vector<64x128xf32>
    %cst_15 = arith.constant dense<0xFF800000> : vector<64xf32>
    %54 = vector.multi_reduction <maximumf>, %53, %cst_15 [1] : vector<64x128xf32> to vector<64xf32>
    %55 = vector.shape_cast %54 : vector<64xf32> to vector<64x1xf32>
    %56 = vector.broadcast %55 : vector<64x1xf32> to vector<64x128xf32>
    %57 = arith.subf %53, %56 : vector<64x128xf32>
    %58 = math.exp %57 : vector<64x128xf32>
    %59 = vector.broadcast %14 : vector<1x128xf32> to vector<64x128xf32>
    %60 = arith.mulf %58, %59 : vector<64x128xf32>
    %cst_16 = arith.constant dense<0.000000e+00> : vector<64xf32>
    %61 = vector.multi_reduction <add>, %60, %cst_16 [1] : vector<64x128xf32> to vector<64xf32>
    %62 = vector.shape_cast %61 : vector<64xf32> to vector<64x1xf32>
    %63 = tpu.reciprocal %62 {approx = true} : vector<64x1xf32> -> vector<64x1xf32>
    %64 = vector.broadcast %63 : vector<64x1xf32> to vector<64x128xf32>
    %65 = arith.mulf %60, %64 : vector<64x128xf32>
    %66 = arith.truncf %18 : vector<64x32xf32> to vector<64x32xbf16>
    %67 = arith.truncf %65 : vector<64x128xf32> to vector<64x128xbf16>
    %cst_17 = arith.constant dense<0.000000e+00> : vector<32x128xf32>
    %68 = tpu.matmul %66, %67, %cst_17 {dimension_numbers = #tpu.dot_dimension_numbers<[0], [0], [1], [1], [0, 1, 1, 1], [], []>} : vector<64x32xbf16>, vector<64x128xbf16>, vector<32x128xf32> -> vector<32x128xf32>
    %cst_18 = arith.constant dense<0.000000e+00> : vector<128xf32>
    %69 = vector.multi_reduction <add>, %65, %cst_18 [0] : vector<64x128xf32> to vector<128xf32>
    %70 = vector.shape_cast %69 : vector<128xf32> to vector<1x128xf32>
    %cst_19 = arith.constant 9.99999996E-13 : f32
    %71 = vector.broadcast %cst_19 : f32 to vector<1x128xf32>
    %72 = arith.maximumf %70, %71 : vector<1x128xf32>
    %73 = tpu.reciprocal %72 {approx = true} : vector<1x128xf32> -> vector<1x128xf32>
    %74 = vector.broadcast %73 : vector<1x128xf32> to vector<32x128xf32>
    %75 = arith.mulf %68, %74 : vector<32x128xf32>
    %76 = arith.mulf %75, %75 : vector<32x128xf32>
    %cst_20 = arith.constant dense<0.000000e+00> : vector<128xf32>
    %77 = vector.multi_reduction <add>, %76, %cst_20 [0] : vector<32x128xf32> to vector<128xf32>
    %78 = vector.shape_cast %77 : vector<128xf32> to vector<1x128xf32>
    %cst_21 = arith.constant 1.000000e-24 : f32
    %79 = vector.broadcast %cst_21 : f32 to vector<1x128xf32>
    %80 = arith.maximumf %78, %79 : vector<1x128xf32>
    %81 = math.rsqrt %80 : vector<1x128xf32>
    %82 = vector.broadcast %81 : vector<1x128xf32> to vector<32x128xf32>
    %83 = arith.mulf %75, %82 : vector<32x128xf32>
    %c0_22 = arith.constant 0 : index
    %c0_23 = arith.constant 0 : index
    %c0_24 = arith.constant 0 : index
    %84 = vector.load %arg4[%c0_22, %c0_23, %c0_24] : memref<1x32x128xf32, #tpu.memory_space<vmem>>, vector<1x32x128xf32>
    %85 = vector.shape_cast %84 : vector<1x32x128xf32> to vector<32x128xf32>
    %86 = vector.shape_cast %83 : vector<32x128xf32> to vector<1x32x128xf32>
    tpu.vector_store %arg4[%c0_22, %c0_23, %c0_24], %86 {strides = array<i32>} : memref<1x32x128xf32, #tpu.memory_space<vmem>>, vector<1x32x128xf32>,
    %c0_25 = arith.constant 0 : index
    %c0_26 = arith.constant 0 : index
    %c0_27 = arith.constant 0 : index
    %87 = vector.load %arg5[%c0_25, %c0_26, %c0_27] : memref<1x64x128xf32, #tpu.memory_space<vmem>>, vector<1x64x128xf32>
    %88 = vector.shape_cast %87 : vector<1x64x128xf32> to vector<64x128xf32>
    %89 = vector.shape_cast %65 : vector<64x128xf32> to vector<1x64x128xf32>
    tpu.vector_store %arg5[%c0_25, %c0_26, %c0_27], %89 {strides = array<i32>} : memref<1x64x128xf32, #tpu.memory_space<vmem>>, vector<1x64x128xf32>,
    return
  }
  func.func @transform_0(%arg0: i32) -> (i32, i32, i32) {
    %c0_i32 = arith.constant 0 : i32
    %c0_i32_0 = arith.constant 0 : i32
    %c0_i32_1 = arith.constant 0 : i32
    return %arg0, %c0_i32, %c0_i32_0 : i32, i32, i32
  }
  func.func @transform_1(%arg0: i32) -> (i32, i32) {
    %c0_i32 = arith.constant 0 : i32
    %c0_i32_0 = arith.constant 0 : i32
    %c0_i32_1 = arith.constant 0 : i32
    return %c0_i32, %c0_i32_0 : i32, i32
  }
  func.func @transform_2(%arg0: i32) -> (i32, i32) {
    %c0_i32 = arith.constant 0 : i32
    %c0_i32_0 = arith.constant 0 : i32
    %c0_i32_1 = arith.constant 0 : i32
    return %c0_i32, %c0_i32_0 : i32, i32
  }
  func.func @transform_3(%arg0: i32) -> (i32, i32, i32) {
    %c0_i32 = arith.constant 0 : i32
    %c0_i32_0 = arith.constant 0 : i32
    %c0_i32_1 = arith.constant 0 : i32
    return %arg0, %c0_i32, %c0_i32_0 : i32, i32, i32
  }
  func.func @transform_4(%arg0: i32) -> (i32, i32, i32) {
    %c0_i32 = arith.constant 0 : i32
    %c0_i32_0 = arith.constant 0 : i32
    %c0_i32_1 = arith.constant 0 : i32
    return %arg0, %c0_i32, %c0_i32_0 : i32, i32, i32
  }
}

</mosaic_0001>

<llo_original>
// kernel: tpu_custom_call.1
$region0: #{tpu_custom_call.1}
  #allocation0 [shape = 'u32[]', space=smem, size = 0x4, offset = 0x4, fixed_abs, tag = 'smem constant byte address 0x4 - core index']
  #allocation1 [shape = 'u32[144,128]{1,0:T(1,128)}', space=vmem, size = 0x12000, scoped, tag = 'internal scratch']
  %s0 = inlined_call_operand.hbm [shape: bf16[2,32,64], index: 0, kind: input, shape index: {}]
  %s1 = inlined_call_operand.hbm [shape: bf16[32,512], index: 1, kind: input, shape index: {}]
  %s2 = inlined_call_operand.vmem [shape: f32[1,512], index: 2, kind: input, shape index: {}]
  %s3 = inlined_call_operand.hbm [shape: f32[2,32,128], index: 3, kind: output, shape index: {0}]
  %s4 = inlined_call_operand.hbm [shape: f32[2,64,128], index: 4, kind: output, shape index: {1}]
  %5 = xla_tuple %s3, %s4
  %s6 = sld [smem:[#allocation0]]
  $region61: #{tpu_custom_call.1} parent=0
    _
  %s8 = ssub.s32 1, %s6
  %s9 = scalar_select 0, %s8, %s6
  $region1: #{tpu_custom_call.1} parent=0
    #allocation2 [shape = 'u8[16384]{0}', space=vmem, size = 0x4000, scoped, tag = 'input window, operand 0']
    #allocation3 [shape = 's32[2]{0}', space=sflag, size = 0x8, scoped, tag = 'scoped memory for tpu_custom_call.1']
    #allocation4 [shape = 's32[2]{0}', space=sflag, size = 0x8, scoped, tag = 'scoped memory for tpu_custom_call.1']
    #allocation5 [shape = 'u8[32768]{0}', space=vmem, size = 0x8000, scoped, tag = 'input window, operand 1, single buffered']
    #allocation6 [shape = 's32[1]{0}', space=sflag, size = 0x4, scoped, tag = 'scoped memory for tpu_custom_call.1']
    #allocation7 [shape = 'u8[32768]{0}', space=vmem, size = 0x8000, scoped, tag = 'output window, operand 0']
    #allocation8 [shape = 'u8[65536]{0}', space=vmem, size = 0x10000, scoped, tag = 'output window, operand 1']
    #allocation9 [shape = 's32[2]{0}', space=sflag, size = 0x8, scoped, tag = 'scoped memory for tpu_custom_call.1']
    %10 = vsyncpa [#allocation3], 0
    %s11 = scalar_lea.sflag [#allocation3], 1
    %12 = vsyncpa %s11, 0
    %13 = vsyncpa [#allocation6], 0
    %14 = vsyncpa [#allocation4], 0
    %s15 = scalar_lea.sflag [#allocation4], 1
    %16 = vsyncpa %s15, 0
    %17 = vsyncpa [#allocation9], 0
    %s18 = scalar_lea.sflag [#allocation9], 1
    %19 = vsyncpa %s18, 0
    loop: start=0, step=1, limit=4
    $region2: #{tpu_custom_call.1} parent=1 // loop_pre_header
      _
    $region3: #{tpu_custom_call.1} parent=1 // loop_header
      %s21 = sphi 0, %s25
      %p22 = scmp.ge.s32.totalorder %s21, 4
      %s31 = sphi 0, %s33
      %s34 = sphi 0, %s31
      %s35 = sphi 0, %s34
      %s51 = sphi 0, %s35
      %s55 = sphi 0, %s55
      %s57 = sphi 0, %s55
      %s58 = sphi 0, %s57
      %s72 = sphi 0, %s58
      %s76 = sphi 0, %s76
      %s78 = sphi 0, %s76
      %s79 = sphi 0, %s78
      %s93 = sphi 0, %s79
      %s99 = sphi 0, %s101
      %s102 = sphi 0, %s99
      %s103 = sphi 0, %s102
      %s119 = sphi 0, %s103
      %s125 = sphi 0, %s127
      %s128 = sphi 0, %s125
      %s129 = sphi 0, %s128
      %s145 = sphi 0, %s129
    $region4: #{tpu_custom_call.1} parent=1 // loop_header_branch
      %24 = sbr.rel (%p22) target = $region8
    $region5: #{tpu_custom_call.1} parent=1 // loop_body
      %s26 = ssub.s32 %s21, 1
      %s27 = ssub.s32 %s21, 2
      %s28 = sadd.s32 %s21, 1
      %s29 = ssub.s32 %s21, %s28
      %p30 = scmp.eq.s32.totalorder %s29, 0
      %s32 = sadd.s32 %s31, 1
      %s33 = scalar_select %p30, %s31, %s32
      %p36 = pneg %p30
      %p37 = scmp.eq.s32.totalorder %s21, 1
      %p38 = por %p36, %p37
      %p39 = scmp.ne.s32.totalorder %s31, %s34
      %p40 = scmp.eq.s32.totalorder %s21, 0
      %p41 = por %p39, %p40
      %p42 = scmp.ne.s32.totalorder %s31, %s34
      %p43 = scmp.eq.s32.totalorder %s26, 1
      %p44 = por %p42, %p43
      %p45 = scmp.ne.s32.totalorder %s34, %s35
      %p46 = scmp.eq.s32.totalorder %s26, 0
      %p47 = por %p45, %p46
      %p48 = scmp.ne.s32.totalorder %s34, %s35
      %p49 = scmp.eq.s32.totalorder %s27, 1
      %p50 = por %p48, %p49
      %p52 = scmp.ne.s32.totalorder %s35, %s51
      %p53 = scmp.eq.s32.totalorder %s27, 0
      %p54 = por %p52, %p53
      %s56 = sadd.s32 %s55, 1
      %p59 = scmp.eq.s32.totalorder %s21, 1
      %p60 = scmp.ne.s32.totalorder %s55, %s57
      %p61 = scmp.eq.s32.totalorder %s21, 0
      %p62 = por %p60, %p61
      %p63 = scmp.ne.s32.totalorder %s55, %s57
      %p64 = scmp.eq.s32.totalorder %s26, 1
      %p65 = por %p63, %p64
      %p66 = scmp.ne.s32.totalorder %s57, %s58
      %p67 = scmp.eq.s32.totalorder %s26, 0
      %p68 = por %p66, %p67
      %p69 = scmp.ne.s32.totalorder %s57, %s58
      %p70 = scmp.eq.s32.totalorder %s27, 1
      %p71 = por %p69, %p70
      %p73 = scmp.ne.s32.totalorder %s58, %s72
      %p74 = scmp.eq.s32.totalorder %s27, 0
      %p75 = por %p73, %p74
      %s77 = sadd.s32 %s76, 1
      %p80 = scmp.eq.s32.totalorder %s21, 1
      %p81 = scmp.ne.s32.totalorder %s76, %s78
      %p82 = scmp.eq.s32.totalorder %s21, 0
      %p83 = por %p81, %p82
      %p84 = scmp.ne.s32.totalorder %s76, %s78
      %p85 = scmp.eq.s32.totalorder %s26, 1
      %p86 = por %p84, %p85
      %p87 = scmp.ne.s32.totalorder %s78, %s79
      %p88 = scmp.eq.s32.totalorder %s26, 0
      %p89 = por %p87, %p88
      %p90 = scmp.ne.s32.totalorder %s78, %s79
      %p91 = scmp.eq.s32.totalorder %s27, 1
      %p92 = por %p90, %p91
      %p94 = scmp.ne.s32.totalorder %s79, %s93
      %p95 = scmp.eq.s32.totalorder %s27, 0
      %p96 = por %p94, %p95
      %s97 = ssub.s32 %s21, %s28
      %p98 = scmp.eq.s32.totalorder %s97, 0
      %s100 = sadd.s32 %s99, 1
      %s101 = scalar_select %p98, %s99, %s100
      %p104 = pneg %p98
      %p105 = scmp.eq.s32.totalorder %s21, 1
      %p106 = por %p104, %p105
      %p107 = scmp.ne.s32.totalorder %s99, %s102
      %p108 = scmp.eq.s32.totalorder %s21, 0
      %p109 = por %p107, %p108
      %p110 = scmp.ne.s32.totalorder %s99, %s102
      %p111 = scmp.eq.s32.totalorder %s26, 1
      %p112 = por %p110, %p111
      %p113 = scmp.ne.s32.totalorder %s102, %s103
      %p114 = scmp.eq.s32.totalorder %s26, 0
      %p115 = por %p113, %p114
      %p116 = scmp.ne.s32.totalorder %s102, %s103
      %p117 = scmp.eq.s32.totalorder %s27, 1
      %p118 = por %p116, %p117
      %p120 = scmp.ne.s32.totalorder %s103, %s119
      %p121 = scmp.eq.s32.totalorder %s27, 0
      %p122 = por %p120, %p121
      %s123 = ssub.s32 %s21, %s28
      %p124 = scmp.eq.s32.totalorder %s123, 0
      %s126 = sadd.s32 %s125, 1
      %s127 = scalar_select %p124, %s125, %s126
      %p130 = pneg %p124
      %p131 = scmp.eq.s32.totalorder %s21, 1
      %p132 = por %p130, %p131
      %p133 = scmp.ne.s32.totalorder %s125, %s128
      %p134 = scmp.eq.s32.totalorder %s21, 0
      %p135 = por %p133, %p134
      %p136 = scmp.ne.s32.totalorder %s125, %s128
      %p137 = scmp.eq.s32.totalorder %s26, 1
      %p138 = por %p136, %p137
      %p139 = scmp.ne.s32.totalorder %s128, %s129
      %p140 = scmp.eq.s32.totalorder %s26, 0
      %p141 = por %p139, %p140
      %p142 = scmp.ne.s32.totalorder %s128, %s129
      %p143 = scmp.eq.s32.totalorder %s27, 1
      %p144 = por %p142, %p143
      %p146 = scmp.ne.s32.totalorder %s129, %s145
      %p147 = scmp.eq.s32.totalorder %s27, 0
      %p148 = por %p146, %p147
      %p149 = scmp.le.s32.totalorder 1, %s21
      %p150 = scmp.lt.s32.totalorder %s21, 3
      %p151 = pnand %p149, %p150
      %p152 = pneg %p151
      // Predicated region
      $region9: #{tpu_custom_call.1} parent=5 // pred_check
        _
      $region10: #{tpu_custom_call.1} parent=5 // pred_check_branch
        %154 = sbr.rel (%p151) target = $region12
      $region11: #{tpu_custom_call.1} parent=5 // pred_region
        %s155 = ssub.s32 %s21, 1
        // Predicated region
        $region13: #{tpu_custom_call.1} parent=11 // pred_check
          %p156 = pneg %p68
        $region14: #{tpu_custom_call.1} parent=11 // pred_check_branch
          %158 = sbr.rel (%p156) target = $region16
        $region15: #{tpu_custom_call.1} parent=11 // pred_region
          %s160 = ssub.s32 1024, 1024
          %161 = vsyncadd [#allocation6], %s160
          %s162 = sshll.u32 [#allocation5], 4
          %s163 = int_to_ptr.vmem [resolvable:$true] %s162
          %168 = dma.hbm_to_vmem [thread:$0]  %s1, 1024, %s163, [#allocation6], 256, 256, 16
        $region16: #{tpu_custom_call.1} parent=11 // pred_fallthru
          _
        // Predicated region
        $region17: #{tpu_custom_call.1} parent=11 // pred_check
          %p169 = pneg %p89
        $region18: #{tpu_custom_call.1} parent=11 // pred_check_branch
          %171 = sbr.rel (%p169) target = $region20
        $region19: #{tpu_custom_call.1} parent=11 // pred_region
          _
        $region20: #{tpu_custom_call.1} parent=11 // pred_fallthru
          _
      $region12: #{tpu_custom_call.1} parent=5 // pred_fallthru
        _
      %p172 = scmp.lt.s32.totalorder %s21, 2
      // Predicated region
      $region21: #{tpu_custom_call.1} parent=5 // pred_check
        %p173 = pneg %p172
      $region22: #{tpu_custom_call.1} parent=5 // pred_check_branch
        %175 = sbr.rel (%p173) target = $region24
      $region23: #{tpu_custom_call.1} parent=5 // pred_region
        // Predicated region
        $region25: #{tpu_custom_call.1} parent=23 // pred_check
          %p176 = pneg %p41
        $region26: #{tpu_custom_call.1} parent=23 // pred_check_branch
          %178 = sbr.rel (%p176) target = $region28
        $region27: #{tpu_custom_call.1} parent=23 // pred_region
          %s179 = sand.u32 %s31, 1
          %s180 = scalar_lea.sflag [#allocation3], %s179
          %s181 = sand.u32 %s31, 1
          %s182 = smul.addr %s181, 16
          %s183 = scalar_lea.vmem [#allocation2], %s182
          %s185 = ssub.s32 256, 256
          %186 = vsyncadd %s180, %s185
          %s187 = smul.addr %s21, 4
          %s188 = smul.addr %s187, 64
          %s189 = scalar_lea.hbm %s0, %s188
          %s190 = sshll.u32 %s183, 4
          %s191 = int_to_ptr.vmem [resolvable:$true] %s190
          %196 = dma.hbm_to_vmem [thread:$0]  %s189, 256, %s191, %s180, 64, 64, 4
        $region28: #{tpu_custom_call.1} parent=23 // pred_fallthru
          _
      $region24: #{tpu_custom_call.1} parent=5 // pred_fallthru
        _
      %p197 = scmp.le.s32.totalorder 1, %s21
      %p198 = scmp.lt.s32.totalorder %s21, 3
      %p199 = pnand %p197, %p198
      %p200 = pneg %p199
      // Predicated region
      $region29: #{tpu_custom_call.1} parent=5 // pred_check
        _
      $region30: #{tpu_custom_call.1} parent=5 // pred_check_branch
        %202 = sbr.rel (%p199) target = $region32
      $region31: #{tpu_custom_call.1} parent=5 // pred_region
        %s203 = ssub.s32 %s21, 1
        %s204 = sand.u32 %s34, 1
        %s205 = scalar_lea.sflag [#allocation3], %s204
        %s206 = sand.u32 %s34, 1
        %s207 = smul.addr %s206, 16
        %s208 = scalar_lea.vmem [#allocation2], %s207
        // Predicated region
        $region33: #{tpu_custom_call.1} parent=31 // pred_check
          %p209 = pneg %p47
        $region34: #{tpu_custom_call.1} parent=31 // pred_check_branch
          %211 = sbr.rel (%p209) target = $region36
        $region35: #{tpu_custom_call.1} parent=31 // pred_region
          %212 = dma.done %s205, 256
        $region36: #{tpu_custom_call.1} parent=31 // pred_fallthru
          _
        // Predicated region
        $region37: #{tpu_custom_call.1} parent=31 // pred_check
          %p213 = pneg %p68
        $region38: #{tpu_custom_call.1} parent=31 // pred_check_branch
          %215 = sbr.rel (%p213) target = $region40
        $region39: #{tpu_custom_call.1} parent=31 // pred_region
          %216 = dma.done [#allocation6], 1024
        $region40: #{tpu_custom_call.1} parent=31 // pred_fallthru
          _
        %s217 = sand.u32 %s34, 1
        %s218 = scalar_lea.sflag [#allocation3], %s217
        %s219 = sand.u32 %s34, 1
        %s220 = smul.addr %s219, 16
        %s221 = scalar_lea.vmem [#allocation2], %s220
        %p222 = pneg %p47
        %p223 = pneg %p44
        %p224 = pneg %p68
        %p225 = pneg %p65
        %p226 = pneg %p89
        %p227 = pneg %p86
        %p228 = pneg %p115
        %p229 = pneg %p112
        %s230 = sand.u32 %s102, 1
        %s231 = scalar_lea.sflag [#allocation4], %s230
        %s232 = sand.u32 %s102, 1
        %s233 = smul.addr %s232, 32
        %s234 = scalar_lea.vmem [#allocation7], %s233
        %p235 = pneg %p141
        %p236 = pneg %p138
        %s237 = sand.u32 %s128, 1
        %s238 = scalar_lea.sflag [#allocation9], %s237
        %s239 = sand.u32 %s128, 1
        %s240 = smul.addr %s239, 64
        %s241 = scalar_lea.vmem [#allocation8], %s240
        %v243 = vld [vmem:[%s208] sm:$0xf]
        %v244 = vld [vmem:[%s208 + $0x4] sm:$0xf]
        %v245 = vld [vmem:[%s208 + $0x8] sm:$0xf]
        %v246 = vld [vmem:[%s208 + $0xc] sm:$0xf]
        %v247 = vld [vmem:[#allocation5] sm:$0xff]
        %v248 = vld [vmem:[#allocation5 + $0x8] sm:$0xff]
        %v249 = vld [vmem:[#allocation5 + $0x10] sm:$0xff]
        %v250 = vld [vmem:[#allocation5 + $0x18] sm:$0xff]
        %v251 = vld [vmem:[#allocation5 + $0x20] sm:$0xff]
        %v252 = vld [vmem:[#allocation5 + $0x28] sm:$0xff]
        %v253 = vld [vmem:[#allocation5 + $0x30] sm:$0xff]
        %v254 = vld [vmem:[#allocation5 + $0x38] sm:$0xff]
        %v255 = vld [vmem:[%s2] sm:$0xf]
        %v257 = vlaneseq
        %v258 = vshrl.u32 %v257, 7
        %v259 = vsub.s32 0, %v258
        %v260 = vrot.slane %v255, %v259
        %v261 = vlaneseq
        %v262 = vshrl.u32 %v261, 7
        %v263 = vsub.s32 1, %v262
        %v264 = vrot.slane %v255, %v263
        %v265 = vlaneseq
        %v266 = vshrl.u32 %v265, 7
        %v267 = vsub.s32 2, %v266
        %v268 = vrot.slane %v255, %v267
        %v269 = vlaneseq
        %v270 = vshrl.u32 %v269, 7
        %v271 = vsub.s32 3, %v270
        %v272 = vrot.slane %v255, %v271
        %v281 = vunpack.c.l.b16 %v243
        %v282 = vunpack.c.l.b16 %v244
        %v283 = vunpack.c.l.b16 %v245
        %v284 = vunpack.c.l.b16 %v246
        %v285 = vpack.c.b16 %v282, %v281
        %v286 = vpack.c.b16 %v284, %v283
        %289 = vxpose.xlu0.c.b16.start [1/8] %v285, 128
        %290 = vxpose.xlu0.c.b16.cont [2/8] %v286, 128
        %291 = vxpose.xlu0.c.b16.cont [3/8] 0, 128
        %292 = vxpose.xlu0.c.b16.cont [4/8] 0, 128
        %293 = vxpose.xlu0.c.b16.cont [5/8] 0, 128
        %294 = vxpose.xlu0.c.b16.cont [6/8] 0, 128
        %295 = vxpose.xlu0.c.b16.cont [7/8] 0, 128
        %296 = vxpose.xlu0.c.b16.end [8/8] 0, 128
        %v297 = vpop.trf.xlu0
        %v298 = vpop.trf.xlu0
        %v299 = vpop.trf.xlu0
        %v300 = vpop.trf.xlu0
        %v301 = vpop.trf.xlu0
        %v302 = vpop.trf.xlu0
        %v303 = vpop.trf.xlu0
        %v304 = vpop.trf.xlu0
        %v313 = vunpack.c.l.b16 %v247
        %v314 = vunpack.c.h.b16 %v247
        %v315 = vunpack.c.l.b16 %v248
        %v316 = vunpack.c.h.b16 %v248
        %v317 = vunpack.c.l.b16 %v249
        %v318 = vunpack.c.h.b16 %v249
        %v319 = vunpack.c.l.b16 %v250
        %v320 = vunpack.c.h.b16 %v250
        %v321 = vunpack.c.l.b16 %v251
        %v322 = vunpack.c.h.b16 %v251
        %v323 = vunpack.c.l.b16 %v252
        %v324 = vunpack.c.h.b16 %v252
        %v325 = vunpack.c.l.b16 %v253
        %v326 = vunpack.c.h.b16 %v253
        %v327 = vunpack.c.l.b16 %v254
        %v328 = vunpack.c.h.b16 %v254
        %v329 = vpack.c.b16 %v317, %v313
        %v330 = vpack.c.b16 %v318, %v314
        %v331 = vpack.c.b16 %v319, %v315
        %v332 = vpack.c.b16 %v320, %v316
        %v333 = vpack.c.b16 %v325, %v321
        %v334 = vpack.c.b16 %v326, %v322
        %v335 = vpack.c.b16 %v327, %v323
        %v336 = vpack.c.b16 %v328, %v324
        %vm345 = vcmask 261120
        %v347 = vsel %vm345, %v297, 0
        %v350 = vsel %vm345, %v298, 0
        %v353 = vsel %vm345, %v299, 0
        %v356 = vsel %vm345, %v300, 0
        %358 = vmatprep.subr.bf16.mxu0 %v330
        %359 = vmatpush1.bf16.msra.mxu0 %v329
        %360 = vmatprep.subr.bf16.mxu0 %v334
        %361 = vmatpush1.bf16.msra.mxu0 %v333
        %362 = vmatprep.subr.bf16.mxu0 0
        %363 = vmatpush1.bf16.msra.mxu0 0
        %364 = vmatprep.subr.bf16.mxu0 0
        %365 = vmatpush1.bf16.msra.mxu0 0
        %366 = vmatprep.subr.bf16.mxu0 0
        %367 = vmatpush1.bf16.msra.mxu0 0
        %368 = vmatprep.subr.bf16.mxu0 0
        %369 = vmatpush1.bf16.msra.mxu0 0
        %370 = vmatprep.subr.bf16.mxu0 0
        %371 = vmatpush1.bf16.msra.mxu0 0
        %372 = vmatprep.subr.bf16.mxu0 0
        %373 = vmatpush1.bf16.msra.mxu0 0
        %374 = vmatprep.subr.bf16.mxu0 0
        %375 = vmatpush1.bf16.msra.mxu0 0
        %376 = vmatprep.subr.bf16.mxu0 0
        %377 = vmatpush1.bf16.msra.mxu0 0
        %378 = vmatprep.subr.bf16.mxu0 0
        %379 = vmatpush1.bf16.msra.mxu0 0
        %380 = vmatprep.subr.bf16.mxu0 0
        %381 = vmatpush1.bf16.msra.mxu0 0
        %382 = vmatprep.subr.bf16.mxu0 0
        %383 = vmatpush1.bf16.msra.mxu0 0
        %384 = vmatprep.subr.bf16.mxu0 0
        %385 = vmatpush1.bf16.msra.mxu0 0
        %386 = vmatprep.subr.bf16.mxu0 0
        %387 = vmatpush1.bf16.msra.mxu0 0
        %388 = vmatprep.subr.bf16.mxu0 0
        %389 = vmatpush1.bf16.msra.mxu0 0
        %390 = vmatprep.mubr.bf16.mxu0 0
        %391 = vmatmul.mubr.bf16.gmra.mrb[0].mxu0 %v347
        %v392 = vpop.f32.mrb[0].mxu0
        %v393 = vadd.f32 %v260, %v392
        %v394 = vpop.f32.mrb[0].mxu0
        %v395 = vadd.f32 %v264, %v394
        %v396 = vpop.f32.mrb[0].mxu0
        %v397 = vadd.f32 %v260, %v396
        %v398 = vpop.f32.mrb[0].mxu0
        %v399 = vadd.f32 %v264, %v398
        %400 = vmatprep.mubr.bf16.mxu0 0
        %401 = vmatmul.mubr.bf16.gmra.mrb[0].mxu0 %v350
        %v402 = vpop.f32.mrb[0].mxu0
        %v403 = vadd.f32 %v260, %v402
        %v404 = vpop.f32.mrb[0].mxu0
        %v405 = vadd.f32 %v264, %v404
        %v406 = vpop.f32.mrb[0].mxu0
        %v407 = vadd.f32 %v260, %v406
        %v408 = vpop.f32.mrb[0].mxu0
        %v409 = vadd.f32 %v264, %v408
        %410 = vmatprep.mubr.bf16.mxu0 0
        %411 = vmatmul.mubr.bf16.gmra.mrb[0].mxu0 %v353
        %v412 = vpop.f32.mrb[0].mxu0
        %v413 = vadd.f32 %v260, %v412
        %v414 = vpop.f32.mrb[0].mxu0
        %v415 = vadd.f32 %v264, %v414
        %v416 = vpop.f32.mrb[0].mxu0
        %v417 = vadd.f32 %v260, %v416
        %v418 = vpop.f32.mrb[0].mxu0
        %v419 = vadd.f32 %v264, %v418
        %420 = vmatprep.mubr.bf16.mxu0 0
        %421 = vmatmul.mubr.bf16.gmra.mrb[0].mxu0 %v356
        %v422 = vpop.f32.mrb[0].mxu0
        %v423 = vadd.f32 %v260, %v422
        %v424 = vpop.f32.mrb[0].mxu0
        %v425 = vadd.f32 %v264, %v424
        %v426 = vpop.f32.mrb[0].mxu0
        %v427 = vadd.f32 %v260, %v426
        %v428 = vpop.f32.mrb[0].mxu0
        %v429 = vadd.f32 %v264, %v428
        %430 = vdwg.mxu0
        %431 = vmatprep.subr.bf16.mxu0 %v332
        %432 = vmatpush1.bf16.msra.mxu0 %v331
        %433 = vmatprep.subr.bf16.mxu0 %v336
        %434 = vmatpush1.bf16.msra.mxu0 %v335
        %435 = vmatprep.subr.bf16.mxu0 0
        %436 = vmatpush1.bf16.msra.mxu0 0
        %437 = vmatprep.subr.bf16.mxu0 0
        %438 = vmatpush1.bf16.msra.mxu0 0
        %439 = vmatprep.subr.bf16.mxu0 0
        %440 = vmatpush1.bf16.msra.mxu0 0
        %441 = vmatprep.subr.bf16.mxu0 0
        %442 = vmatpush1.bf16.msra.mxu0 0
        %443 = vmatprep.subr.bf16.mxu0 0
        %444 = vmatpush1.bf16.msra.mxu0 0
        %445 = vmatprep.subr.bf16.mxu0 0
        %446 = vmatpush1.bf16.msra.mxu0 0
        %447 = vmatprep.subr.bf16.mxu0 0
        %448 = vmatpush1.bf16.msra.mxu0 0
        %449 = vmatprep.subr.bf16.mxu0 0
        %450 = vmatpush1.bf16.msra.mxu0 0
        %451 = vmatprep.subr.bf16.mxu0 0
        %452 = vmatpush1.bf16.msra.mxu0 0
        %453 = vmatprep.subr.bf16.mxu0 0
        %454 = vmatpush1.bf16.msra.mxu0 0
        %455 = vmatprep.subr.bf16.mxu0 0
        %456 = vmatpush1.bf16.msra.mxu0 0
        %457 = vmatprep.subr.bf16.mxu0 0
        %458 = vmatpush1.bf16.msra.mxu0 0
        %459 = vmatprep.subr.bf16.mxu0 0
        %460 = vmatpush1.bf16.msra.mxu0 0
        %461 = vmatprep.subr.bf16.mxu0 0
        %462 = vmatpush1.bf16.msra.mxu0 0
        %463 = vmatprep.mubr.bf16.mxu0 0
        %464 = vmatmul.mubr.bf16.gmra.mrb[0].mxu0 %v347
        %v465 = vpop.f32.mrb[0].mxu0
        %v466 = vadd.f32 %v268, %v465
        %v467 = vpop.f32.mrb[0].mxu0
        %v468 = vadd.f32 %v272, %v467
        %v469 = vpop.f32.mrb[0].mxu0
        %v470 = vadd.f32 %v268, %v469
        %v471 = vpop.f32.mrb[0].mxu0
        %v472 = vadd.f32 %v272, %v471
        %473 = vmatprep.mubr.bf16.mxu0 0
        %474 = vmatmul.mubr.bf16.gmra.mrb[0].mxu0 %v350
        %v475 = vpop.f32.mrb[0].mxu0
        %v476 = vadd.f32 %v268, %v475
        %v477 = vpop.f32.mrb[0].mxu0
        %v478 = vadd.f32 %v272, %v477
        %v479 = vpop.f32.mrb[0].mxu0
        %v480 = vadd.f32 %v268, %v479
        %v481 = vpop.f32.mrb[0].mxu0
        %v482 = vadd.f32 %v272, %v481
        %483 = vmatprep.mubr.bf16.mxu0 0
        %484 = vmatmul.mubr.bf16.gmra.mrb[0].mxu0 %v353
        %v485 = vpop.f32.mrb[0].mxu0
        %v486 = vadd.f32 %v268, %v485
        %v487 = vpop.f32.mrb[0].mxu0
        %v488 = vadd.f32 %v272, %v487
        %v489 = vpop.f32.mrb[0].mxu0
        %v490 = vadd.f32 %v268, %v489
        %v491 = vpop.f32.mrb[0].mxu0
        %v492 = vadd.f32 %v272, %v491
        %493 = vmatprep.mubr.bf16.mxu0 0
        %494 = vmatmul.mubr.bf16.gmra.mrb[0].mxu0 %v356
        %v495 = vpop.f32.mrb[0].mxu0
        %v496 = vadd.f32 %v268, %v495
        %v497 = vpop.f32.mrb[0].mxu0
        %v498 = vadd.f32 %v272, %v497
        %v499 = vpop.f32.mrb[0].mxu0
        %v500 = vadd.f32 %v268, %v499
        %v501 = vpop.f32.mrb[0].mxu0
        %v502 = vadd.f32 %v272, %v501
        %503 = vdwg.mxu0
        %v504 = vmax.f32 %v393, 0.0
        %v505 = vmax.f32 %v395, 0.0
        %v506 = vmax.f32 %v466, 0.0
        %v507 = vmax.f32 %v468, 0.0
        %v508 = vmax.f32 %v397, 0.0
        %v509 = vmax.f32 %v399, 0.0
        %v510 = vmax.f32 %v470, 0.0
        %v511 = vmax.f32 %v472, 0.0
        %v512 = vmax.f32 %v403, 0.0
        %v513 = vmax.f32 %v405, 0.0
        %v514 = vmax.f32 %v476, 0.0
        %v515 = vmax.f32 %v478, 0.0
        %v516 = vmax.f32 %v407, 0.0
        %v517 = vmax.f32 %v409, 0.0
        %v518 = vmax.f32 %v480, 0.0
        %v519 = vmax.f32 %v482, 0.0
        %v520 = vmax.f32 %v413, 0.0
        %v521 = vmax.f32 %v415, 0.0
        %v522 = vmax.f32 %v486, 0.0
        %v523 = vmax.f32 %v488, 0.0
        %v524 = vmax.f32 %v417, 0.0
        %v525 = vmax.f32 %v419, 0.0
        %v526 = vmax.f32 %v490, 0.0
        %v527 = vmax.f32 %v492, 0.0
        %v528 = vmax.f32 %v423, 0.0
        %v529 = vmax.f32 %v425, 0.0
        %v530 = vmax.f32 %v496, 0.0
        %v531 = vmax.f32 %v498, 0.0
        %v532 = vmax.f32 %v427, 0.0
        %v533 = vmax.f32 %v429, 0.0
        %v534 = vmax.f32 %v500, 0.0
        %v535 = vmax.f32 %v502, 0.0
        %v536 = vlaneseq
        %v537 = vand.u32 %v536, 127
        %vm538 = vcmp.lt.s32.totalorder %v537, 8
        %v539 = vsel %vm538, 1, 0
        %v540 = vcvt.s32.f32 %v539
        %v541 = vsel %vm345, %v504, -inf
        %v542 = vsel %vm345, %v508, -inf
        %v543 = vsel %vm345, %v512, -inf
        %v544 = vsel %vm345, %v516, -inf
        %v545 = vsel %vm345, %v520, -inf
        %v546 = vmax.f32 %v541, %v545
        %v547 = vsel %vm345, %v524, -inf
        %v548 = vmax.f32 %v542, %v547
        %v549 = vsel %vm345, %v528, -inf
        %v550 = vmax.f32 %v543, %v549
        %v551 = vsel %vm345, %v532, -inf
        %v552 = vmax.f32 %v544, %v551
        %v553 = vmax.f32 %v546, %v548
        %v554 = vmax.f32 %v550, %v552
        %v555 = vmax.f32 %v553, %v554
        %v556 = vrot.slane %v555, 4
        %v557 = vmax.f32 %v555, %v556
        %v558 = vrot.slane %v557, 2
        %v559 = vmax.f32 %v557, %v558
        %v560 = vrot.slane %v559, 1
        %v561 = vmax.f32 %v559, %v560
        %v562 = vsub.f32 %v504, %v561
        %v563 = vsub.f32 %v508, %v561
        %v564 = vsub.f32 %v512, %v561
        %v565 = vsub.f32 %v516, %v561
        %v566 = vsub.f32 %v520, %v561
        %v567 = vsub.f32 %v524, %v561
        %v568 = vsub.f32 %v528, %v561
        %v569 = vsub.f32 %v532, %v561
        %v570 = vmul.f32 %v562, 1.442695
        %v571 = vpow.pop %v570
        %v572 = vmul.f32 %v563, 1.442695
        %v573 = vpow.pop %v572
        %v574 = vmul.f32 %v564, 1.442695
        %v575 = vpow.pop %v574
        %v576 = vmul.f32 %v565, 1.442695
        %v577 = vpow.pop %v576
        %v578 = vmul.f32 %v566, 1.442695
        %v579 = vpow.pop %v578
        %v580 = vmul.f32 %v567, 1.442695
        %v581 = vpow.pop %v580
        %v582 = vmul.f32 %v568, 1.442695
        %v583 = vpow.pop %v582
        %v584 = vmul.f32 %v569, 1.442695
        %v585 = vpow.pop %v584
        %v586 = vsel %vm345, %v571, 0.0
        %v587 = vsel %vm345, %v573, 0.0
        %v588 = vadd.f32 %v586, %v587
        %v589 = vsel %vm345, %v575, 0.0
        %v590 = vadd.f32 %v588, %v589
        %v591 = vsel %vm345, %v577, 0.0
        %v592 = vadd.f32 %v590, %v591
        %v593 = vsel %vm345, %v579, 0.0
        %v594 = vadd.f32 %v592, %v593
        %v595 = vsel %vm345, %v581, 0.0
        %v596 = vadd.f32 %v594, %v595
        %v597 = vsel %vm345, %v583, 0.0
        %v598 = vadd.f32 %v596, %v597
        %v599 = vsel %vm345, %v585, 0.0
        %v600 = vadd.f32 %v598, %v599
        %v601 = vrot.slane %v600, 4
        %v602 = vadd.f32 %v600, %v601
        %v603 = vrot.slane %v602, 2
        %v604 = vadd.f32 %v602, %v603
        %v605 = vrot.slane %v604, 1
        %v606 = vadd.f32 %v604, %v605
        %v607 = vrcp.pop %v606
        %v608 = vmul.f32 %v571, %v607
        %v609 = vmul.f32 %v573, %v607
        %v610 = vmul.f32 %v575, %v607
        %v611 = vmul.f32 %v577, %v607
        %v612 = vmul.f32 %v579, %v607
        %v613 = vmul.f32 %v581, %v607
        %v614 = vmul.f32 %v583, %v607
        %v615 = vmul.f32 %v585, %v607
        %v616 = vsel %vm345, %v505, -inf
        %617 = vmax.xlane.f32.xlu0 %v616
        %v618 = vpop.xlane.xlu0 %617
        %v619 = vsel %vm345, %v509, -inf
        %620 = vmax.xlane.f32.xlu0 %v619
        %v621 = vpop.xlane.xlu0 %620
        %v622 = vsel %vm345, %v513, -inf
        %623 = vmax.xlane.f32.xlu0 %v622
        %v624 = vpop.xlane.xlu0 %623
        %v625 = vsel %vm345, %v517, -inf
        %626 = vmax.xlane.f32.xlu0 %v625
        %v627 = vpop.xlane.xlu0 %626
        %v628 = vsel %vm345, %v521, -inf
        %629 = vmax.xlane.f32.xlu0 %v628
        %v630 = vpop.xlane.xlu0 %629
        %v631 = vsel %vm345, %v525, -inf
        %632 = vmax.xlane.f32.xlu0 %v631
        %v633 = vpop.xlane.xlu0 %632
        %v634 = vsel %vm345, %v529, -inf
        %635 = vmax.xlane.f32.xlu0 %v634
        %v636 = vpop.xlane.xlu0 %635
        %v637 = vsel %vm345, %v533, -inf
        %638 = vmax.xlane.f32.xlu0 %v637
        %v639 = vpop.xlane.xlu0 %638
        %v640 = vsub.f32 %v505, %v618
        %v641 = vsub.f32 %v509, %v621
        %v642 = vsub.f32 %v513, %v624
        %v643 = vsub.f32 %v517, %v627
        %v644 = vsub.f32 %v521, %v630
        %v645 = vsub.f32 %v525, %v633
        %v646 = vsub.f32 %v529, %v636
        %v647 = vsub.f32 %v533, %v639
        %v648 = vmul.f32 %v640, 1.442695
        %v649 = vpow.pop %v648
        %v650 = vmul.f32 %v641, 1.442695
        %v651 = vpow.pop %v650
        %v652 = vmul.f32 %v642, 1.442695
        %v653 = vpow.pop %v652
        %v654 = vmul.f32 %v643, 1.442695
        %v655 = vpow.pop %v654
        %v656 = vmul.f32 %v644, 1.442695
        %v657 = vpow.pop %v656
        %v658 = vmul.f32 %v645, 1.442695
        %v659 = vpow.pop %v658
        %v660 = vmul.f32 %v646, 1.442695
        %v661 = vpow.pop %v660
        %v662 = vmul.f32 %v647, 1.442695
        %v663 = vpow.pop %v662
        %v664 = vsel %vm345, %v649, 0.0
        %665 = vadd.xlane.f32.xlu0 %v664
        %v666 = vpop.xlane.xlu0 %665
        %v667 = vsel %vm345, %v651, 0.0
        %668 = vadd.xlane.f32.xlu0 %v667
        %v669 = vpop.xlane.xlu0 %668
        %v670 = vsel %vm345, %v653, 0.0
        %671 = vadd.xlane.f32.xlu0 %v670
        %v672 = vpop.xlane.xlu0 %671
        %v673 = vsel %vm345, %v655, 0.0
        %674 = vadd.xlane.f32.xlu0 %v673
        %v675 = vpop.xlane.xlu0 %674
        %v676 = vsel %vm345, %v657, 0.0
        %677 = vadd.xlane.f32.xlu0 %v676
        %v678 = vpop.xlane.xlu0 %677
        %v679 = vsel %vm345, %v659, 0.0
        %680 = vadd.xlane.f32.xlu0 %v679
        %v681 = vpop.xlane.xlu0 %680
        %v682 = vsel %vm345, %v661, 0.0
        %683 = vadd.xlane.f32.xlu0 %v682
        %v684 = vpop.xlane.xlu0 %683
        %v685 = vsel %vm345, %v663, 0.0
        %686 = vadd.xlane.f32.xlu0 %v685
        %v687 = vpop.xlane.xlu0 %686
        %v688 = vrcp.pop %v666
        %v689 = vrcp.pop %v669
        %v690 = vrcp.pop %v672
        %v691 = vrcp.pop %v675
        %v692 = vrcp.pop %v678
        %v693 = vrcp.pop %v681
        %v694 = vrcp.pop %v684
        %v695 = vrcp.pop %v687
        %v696 = vmul.f32 %v649, %v688
        %v697 = vmul.f32 %v651, %v689
        %v698 = vmul.f32 %v653, %v690
        %v699 = vmul.f32 %v655, %v691
        %v700 = vmul.f32 %v657, %v692
        %v701 = vmul.f32 %v659, %v693
        %v702 = vmul.f32 %v661, %v694
        %v703 = vmul.f32 %v663, %v695
        %v704 = vpack.c.bf16 %v609, %v608
        %v705 = vpack.c.bf16 %v611, %v610
        %v706 = vpack.c.bf16 %v613, %v612
        %v707 = vpack.c.bf16 %v615, %v614
        %v708 = vpack.c.bf16 %v511, %v507
        %v709 = vpack.c.bf16 %v519, %v515
        %v710 = vpack.c.bf16 %v527, %v523
        %v711 = vpack.c.bf16 %v535, %v531
        %712 = vxpose.xlu0.c.b16.start [1/8] %v704, 128
        %713 = vxpose.xlu0.c.b16.cont [2/8] %v705, 128
        %714 = vxpose.xlu0.c.b16.cont [3/8] %v706, 128
        %715 = vxpose.xlu0.c.b16.cont [4/8] %v707, 128
        %716 = vxpose.xlu0.c.b16.cont [5/8] 0, 128
        %717 = vxpose.xlu0.c.b16.cont [6/8] 0, 128
        %718 = vxpose.xlu0.c.b16.cont [7/8] 0, 128
        %719 = vxpose.xlu0.c.b16.end [8/8] 0, 128
        %v720 = vpop.trf.xlu0
        %v721 = vpop.trf.xlu0
        %v722 = vpop.trf.xlu0
        %v723 = vpop.trf.xlu0
        %v724 = vpop.trf.xlu0
        %v725 = vpop.trf.xlu0
        %v726 = vpop.trf.xlu0
        %v727 = vpop.trf.xlu0
        %vm728 = vcmask 523264
        %v730 = vsel %vm728, %v720, 0
        %v733 = vsel %vm728, %v721, 0
        %735 = vmatprep.subr.bf16.mxu0 0
        %736 = vmatpush1.bf16.msra.mxu0 %v708
        %737 = vmatprep.subr.bf16.mxu0 0
        %738 = vmatpush1.bf16.msra.mxu0 %v709
        %739 = vmatprep.subr.bf16.mxu0 0
        %740 = vmatpush1.bf16.msra.mxu0 %v710
        %741 = vmatprep.subr.bf16.mxu0 0
        %742 = vmatpush1.bf16.msra.mxu0 %v711
        %743 = vmatprep.subr.bf16.mxu0 0
        %744 = vmatpush1.bf16.msra.mxu0 0
        %745 = vmatprep.subr.bf16.mxu0 0
        %746 = vmatpush1.bf16.msra.mxu0 0
        %747 = vmatprep.subr.bf16.mxu0 0
        %748 = vmatpush1.bf16.msra.mxu0 0
        %749 = vmatprep.subr.bf16.mxu0 0
        %750 = vmatpush1.bf16.msra.mxu0 0
        %751 = vmatprep.subr.bf16.mxu0 0
        %752 = vmatpush1.bf16.msra.mxu0 0
        %753 = vmatprep.subr.bf16.mxu0 0
        %754 = vmatpush1.bf16.msra.mxu0 0
        %755 = vmatprep.subr.bf16.mxu0 0
        %756 = vmatpush1.bf16.msra.mxu0 0
        %757 = vmatprep.subr.bf16.mxu0 0
        %758 = vmatpush1.bf16.msra.mxu0 0
        %759 = vmatprep.subr.bf16.mxu0 0
        %760 = vmatpush1.bf16.msra.mxu0 0
        %761 = vmatprep.subr.bf16.mxu0 0
        %762 = vmatpush1.bf16.msra.mxu0 0
        %763 = vmatprep.subr.bf16.mxu0 0
        %764 = vmatpush1.bf16.msra.mxu0 0
        %765 = vmatprep.subr.bf16.mxu0 0
        %766 = vmatpush1.bf16.msra.mxu0 0
        %767 = vmatprep.mubr.bf16.mxu0 0
        %768 = vmatmul.mubr.bf16.gmra.mrb[0].mxu0 %v730
        %v769 = vpop.f32.mrb[0].mxu0
        %v770 = vadd.f32 0.0, %v769
        %v771 = vpop.f32.mrb[0].mxu0
        %v772 = vpop.f32.mrb[0].mxu0
        %v773 = vadd.f32 0.0, %v772
        %v774 = vpop.f32.mrb[0].mxu0
        %775 = vmatprep.mubr.bf16.mxu0 0
        %776 = vmatmul.mubr.bf16.gmra.mrb[0].mxu0 %v733
        %v777 = vpop.f32.mrb[0].mxu0
        %v778 = vadd.f32 0.0, %v777
        %v779 = vpop.f32.mrb[0].mxu0
        %v780 = vpop.f32.mrb[0].mxu0
        %v781 = vadd.f32 0.0, %v780
        %v782 = vpop.f32.mrb[0].mxu0
        %783 = vdwg.mxu0
        %v784 = vpack.c.bf16 %v697, %v696
        %v785 = vpack.c.bf16 %v699, %v698
        %v786 = vpack.c.bf16 %v701, %v700
        %v787 = vpack.c.bf16 %v703, %v702
        %v788 = vpack.c.bf16 %v773, %v770
        %v789 = vpack.c.bf16 %v781, %v778
        %v791 = vsel %vm345, %v784, 0
        %v794 = vsel %vm345, %v785, 0
        %v797 = vsel %vm345, %v786, 0
        %v800 = vsel %vm345, %v787, 0
        %802 = vmatprep.subr.bf16.mxu0 0
        %803 = vmatpush1.bf16.msra.mxu0 %v788
        %804 = vmatprep.subr.bf16.mxu0 0
        %805 = vmatpush1.bf16.msra.mxu0 %v789
        %806 = vmatprep.subr.bf16.mxu0 0
        %807 = vmatpush1.bf16.msra.mxu0 0
        %808 = vmatprep.subr.bf16.mxu0 0
        %809 = vmatpush1.bf16.msra.mxu0 0
        %810 = vmatprep.subr.bf16.mxu0 0
        %811 = vmatpush1.bf16.msra.mxu0 0
        %812 = vmatprep.subr.bf16.mxu0 0
        %813 = vmatpush1.bf16.msra.mxu0 0
        %814 = vmatprep.subr.bf16.mxu0 0
        %815 = vmatpush1.bf16.msra.mxu0 0
        %816 = vmatprep.subr.bf16.mxu0 0
        %817 = vmatpush1.bf16.msra.mxu0 0
        %818 = vmatprep.subr.bf16.mxu0 0
        %819 = vmatpush1.bf16.msra.mxu0 0
        %820 = vmatprep.subr.bf16.mxu0 0
        %821 = vmatpush1.bf16.msra.mxu0 0
        %822 = vmatprep.subr.bf16.mxu0 0
        %823 = vmatpush1.bf16.msra.mxu0 0
        %824 = vmatprep.subr.bf16.mxu0 0
        %825 = vmatpush1.bf16.msra.mxu0 0
        %826 = vmatprep.subr.bf16.mxu0 0
        %827 = vmatpush1.bf16.msra.mxu0 0
        %828 = vmatprep.subr.bf16.mxu0 0
        %829 = vmatpush1.bf16.msra.mxu0 0
        %830 = vmatprep.subr.bf16.mxu0 0
        %831 = vmatpush1.bf16.msra.mxu0 0
        %832 = vmatprep.subr.bf16.mxu0 0
        %833 = vmatpush1.bf16.msra.mxu0 0
        %834 = vmatprep.mubr.bf16.mxu0 0
        %835 = vmatmul.mubr.bf16.gmra.mrb[0].mxu0 %v791
        %v836 = vpop.f32.mrb[0].mxu0
        %v837 = vadd.f32 0.0, %v836
        %v838 = vpop.f32.mrb[0].mxu0
        %v839 = vpop.f32.mrb[0].mxu0
        %v840 = vadd.f32 0.0, %v839
        %v841 = vpop.f32.mrb[0].mxu0
        %842 = vmatprep.mubr.bf16.mxu0 0
        %843 = vmatmul.mubr.bf16.gmra.mrb[0].mxu0 %v794
        %v844 = vpop.f32.mrb[0].mxu0
        %v845 = vadd.f32 0.0, %v844
        %v846 = vpop.f32.mrb[0].mxu0
        %v847 = vpop.f32.mrb[0].mxu0
        %v848 = vadd.f32 0.0, %v847
        %v849 = vpop.f32.mrb[0].mxu0
        %850 = vmatprep.mubr.bf16.mxu0 0
        %851 = vmatmul.mubr.bf16.gmra.mrb[0].mxu0 %v797
        %v852 = vpop.f32.mrb[0].mxu0
        %v853 = vadd.f32 0.0, %v852
        %v854 = vpop.f32.mrb[0].mxu0
        %v855 = vpop.f32.mrb[0].mxu0
        %v856 = vadd.f32 0.0, %v855
        %v857 = vpop.f32.mrb[0].mxu0
        %858 = vmatprep.mubr.bf16.mxu0 0
        %859 = vmatmul.mubr.bf16.gmra.mrb[0].mxu0 %v800
        %v860 = vpop.f32.mrb[0].mxu0
        %v861 = vadd.f32 0.0, %v860
        %v862 = vpop.f32.mrb[0].mxu0
        %v863 = vpop.f32.mrb[0].mxu0
        %v864 = vadd.f32 0.0, %v863
        %v865 = vpop.f32.mrb[0].mxu0
        %866 = vdwg.mxu0
        %v867 = vmul.f32 %v837, %v837
        %v868 = vmul.f32 %v840, %v840
        %v869 = vmul.f32 %v845, %v845
        %v870 = vmul.f32 %v848, %v848
        %v871 = vmul.f32 %v853, %v853
        %v872 = vmul.f32 %v856, %v856
        %v873 = vmul.f32 %v861, %v861
        %v874 = vmul.f32 %v864, %v864
        %v875 = vadd.f32 %v867, %v868
        %v876 = vadd.f32 %v875, %v869
        %v877 = vadd.f32 %v876, %v870
        %v878 = vadd.f32 %v877, %v871
        %v879 = vadd.f32 %v878, %v872
        %v880 = vadd.f32 %v879, %v873
        %v881 = vadd.f32 %v880, %v874
        %v882 = vrot.slane %v881, 4
        %v883 = vadd.f32 %v881, %v882
        %v884 = vrot.slane %v883, 2
        %v885 = vadd.f32 %v883, %v884
        %v886 = vrot.slane %v885, 1
        %v887 = vadd.f32 %v885, %v886
        %v888 = vmax.f32 %v887, 1e-24
        %v889 = vrsqrt.pop %v888
        %v890 = vmul.f32 %v837, %v889
        %v891 = vmul.f32 %v840, %v889
        %v892 = vmul.f32 %v845, %v889
        %v893 = vmul.f32 %v848, %v889
        %v894 = vmul.f32 %v853, %v889
        %v895 = vmul.f32 %v856, %v889
        %v896 = vmul.f32 %v861, %v889
        %v897 = vmul.f32 %v864, %v889
        %898 = vmax.xlane.f32.xlu0 %v890
        %v899 = vpop.xlane.xlu0 %898
        %900 = vmax.xlane.f32.xlu0 %v891
        %v901 = vpop.xlane.xlu0 %900
        %902 = vmax.xlane.f32.xlu0 %v892
        %v903 = vpop.xlane.xlu0 %902
        %904 = vmax.xlane.f32.xlu0 %v893
        %v905 = vpop.xlane.xlu0 %904
        %906 = vmax.xlane.f32.xlu0 %v894
        %v907 = vpop.xlane.xlu0 %906
        %908 = vmax.xlane.f32.xlu0 %v895
        %v909 = vpop.xlane.xlu0 %908
        %910 = vmax.xlane.f32.xlu0 %v896
        %v911 = vpop.xlane.xlu0 %910
        %912 = vmax.xlane.f32.xlu0 %v897
        %v913 = vpop.xlane.xlu0 %912
        %v914 = vsub.f32 %v890, %v899
        %v915 = vsub.f32 %v891, %v901
        %v916 = vsub.f32 %v892, %v903
        %v917 = vsub.f32 %v893, %v905
        %v918 = vsub.f32 %v894, %v907
        %v919 = vsub.f32 %v895, %v909
        %v920 = vsub.f32 %v896, %v911
        %v921 = vsub.f32 %v897, %v913
        %v922 = vmul.f32 %v914, 1.442695
        %v923 = vpow.pop %v922
        %v924 = vmul.f32 %v915, 1.442695
        %v925 = vpow.pop %v924
        %v926 = vmul.f32 %v916, 1.442695
        %v927 = vpow.pop %v926
        %v928 = vmul.f32 %v917, 1.442695
        %v929 = vpow.pop %v928
        %v930 = vmul.f32 %v918, 1.442695
        %v931 = vpow.pop %v930
        %v932 = vmul.f32 %v919, 1.442695
        %v933 = vpow.pop %v932
        %v934 = vmul.f32 %v920, 1.442695
        %v935 = vpow.pop %v934
        %v936 = vmul.f32 %v921, 1.442695
        %v937 = vpow.pop %v936
        %v938 = vmul.f32 %v923, %v540
        %v939 = vmul.f32 %v925, %v540
        %v940 = vmul.f32 %v927, %v540
        %v941 = vmul.f32 %v929, %v540
        %v942 = vmul.f32 %v931, %v540
        %v943 = vmul.f32 %v933, %v540
        %v944 = vmul.f32 %v935, %v540
        %v945 = vmul.f32 %v937, %v540
        %946 = vadd.xlane.f32.xlu0 %v938
        %v947 = vpop.xlane.xlu0 %946
        %948 = vadd.xlane.f32.xlu0 %v939
        %v949 = vpop.xlane.xlu0 %948
        %950 = vadd.xlane.f32.xlu0 %v940
        %v951 = vpop.xlane.xlu0 %950
        %952 = vadd.xlane.f32.xlu0 %v941
        %v953 = vpop.xlane.xlu0 %952
        %954 = vadd.xlane.f32.xlu0 %v942
        %v955 = vpop.xlane.xlu0 %954
        %956 = vadd.xlane.f32.xlu0 %v943
        %v957 = vpop.xlane.xlu0 %956
        %958 = vadd.xlane.f32.xlu0 %v944
        %v959 = vpop.xlane.xlu0 %958
        %960 = vadd.xlane.f32.xlu0 %v945
        %v961 = vpop.xlane.xlu0 %960
        %v962 = vrcp.pop %v947
        %v963 = vrcp.pop %v949
        %v964 = vrcp.pop %v951
        %v965 = vrcp.pop %v953
        %v966 = vrcp.pop %v955
        %v967 = vrcp.pop %v957
        %v968 = vrcp.pop %v959
        %v969 = vrcp.pop %v961
        %v970 = vmul.f32 %v938, %v962
        %v971 = vmul.f32 %v939, %v963
        %v972 = vmul.f32 %v940, %v964
        %v973 = vmul.f32 %v941, %v965
        %v974 = vmul.f32 %v942, %v966
        %v975 = vmul.f32 %v943, %v967
        %v976 = vmul.f32 %v944, %v968
        %v977 = vmul.f32 %v945, %v969
        %v978 = vpack.c.bf16 %v510, %v506
        %v979 = vpack.c.bf16 %v518, %v514
        %v980 = vpack.c.bf16 %v526, %v522
        %v981 = vpack.c.bf16 %v534, %v530
        %v982 = vpack.c.bf16 %v971, %v970
        %v983 = vpack.c.bf16 %v973, %v972
        %v984 = vpack.c.bf16 %v975, %v974
        %v985 = vpack.c.bf16 %v977, %v976
        %986 = vxpose.xlu0.c.b16.start [1/8] %v978, 128
        %987 = vxpose.xlu0.c.b16.cont [2/8] %v979, 128
        %988 = vxpose.xlu0.c.b16.cont [3/8] %v980, 128
        %989 = vxpose.xlu0.c.b16.cont [4/8] %v981, 128
        %990 = vxpose.xlu0.c.b16.cont [5/8] 0, 128
        %991 = vxpose.xlu0.c.b16.cont [6/8] 0, 128
        %992 = vxpose.xlu0.c.b16.cont [7/8] 0, 128
        %993 = vxpose.xlu0.c.b16.end [8/8] 0, 128
        %v994 = vpop.trf.xlu0
        %v995 = vpop.trf.xlu0
        %v996 = vpop.trf.xlu0
        %v997 = vpop.trf.xlu0
        %v998 = vpop.trf.xlu0
        %v999 = vpop.trf.xlu0
        %v1000 = vpop.trf.xlu0
        %v1001 = vpop.trf.xlu0
        %v1003 = vsel %vm728, %v994, 0
        %v1006 = vsel %vm728, %v995, 0
        %1008 = vmatprep.subr.bf16.mxu0 0
        %1009 = vmatpush1.bf16.msra.mxu0 %v982
        %1010 = vmatprep.subr.bf16.mxu0 0
        %1011 = vmatpush1.bf16.msra.mxu0 %v983
        %1012 = vmatprep.subr.bf16.mxu0 0
        %1013 = vmatpush1.bf16.msra.mxu0 %v984
        %1014 = vmatprep.subr.bf16.mxu0 0
        %1015 = vmatpush1.bf16.msra.mxu0 %v985
        %1016 = vmatprep.subr.bf16.mxu0 0
        %1017 = vmatpush1.bf16.msra.mxu0 0
        %1018 = vmatprep.subr.bf16.mxu0 0
        %1019 = vmatpush1.bf16.msra.mxu0 0
        %1020 = vmatprep.subr.bf16.mxu0 0
        %1021 = vmatpush1.bf16.msra.mxu0 0
        %1022 = vmatprep.subr.bf16.mxu0 0
        %1023 = vmatpush1.bf16.msra.mxu0 0
        %1024 = vmatprep.subr.bf16.mxu0 0
        %1025 = vmatpush1.bf16.msra.mxu0 0
        %1026 = vmatprep.subr.bf16.mxu0 0
        %1027 = vmatpush1.bf16.msra.mxu0 0
        %1028 = vmatprep.subr.bf16.mxu0 0
        %1029 = vmatpush1.bf16.msra.mxu0 0
        %1030 = vmatprep.subr.bf16.mxu0 0
        %1031 = vmatpush1.bf16.msra.mxu0 0
        %1032 = vmatprep.subr.bf16.mxu0 0
        %1033 = vmatpush1.bf16.msra.mxu0 0
        %1034 = vmatprep.subr.bf16.mxu0 0
        %1035 = vmatpush1.bf16.msra.mxu0 0
        %1036 = vmatprep.subr.bf16.mxu0 0
        %1037 = vmatpush1.bf16.msra.mxu0 0
        %1038 = vmatprep.subr.bf16.mxu0 0
        %1039 = vmatpush1.bf16.msra.mxu0 0
        %1040 = vmatprep.mubr.bf16.mxu0 0
        %1041 = vmatmul.mubr.bf16.gmra.mrb[0].mxu0 %v1003
        %v1042 = vpop.f32.mrb[0].mxu0
        %v1043 = vadd.f32 0.0, %v1042
        %v1044 = vpop.f32.mrb[0].mxu0
        %v1045 = vpop.f32.mrb[0].mxu0
        %v1046 = vadd.f32 0.0, %v1045
        %v1047 = vpop.f32.mrb[0].mxu0
        %1048 = vmatprep.mubr.bf16.mxu0 0
        %1049 = vmatmul.mubr.bf16.gmra.mrb[0].mxu0 %v1006
        %v1050 = vpop.f32.mrb[0].mxu0
        %v1051 = vadd.f32 0.0, %v1050
        %v1052 = vpop.f32.mrb[0].mxu0
        %v1053 = vpop.f32.mrb[0].mxu0
        %v1054 = vadd.f32 0.0, %v1053
        %v1055 = vpop.f32.mrb[0].mxu0
        %1056 = vdwg.mxu0
        %v1057 = vadd.f32 %v970, %v971
        %v1058 = vadd.f32 %v1057, %v972
        %v1059 = vadd.f32 %v1058, %v973
        %v1060 = vadd.f32 %v1059, %v974
        %v1061 = vadd.f32 %v1060, %v975
        %v1062 = vadd.f32 %v1061, %v976
        %v1063 = vadd.f32 %v1062, %v977
        %v1064 = vrot.slane %v1063, 4
        %v1065 = vadd.f32 %v1063, %v1064
        %v1066 = vrot.slane %v1065, 2
        %v1067 = vadd.f32 %v1065, %v1066
        %v1068 = vrot.slane %v1067, 1
        %v1069 = vadd.f32 %v1067, %v1068
        %v1070 = vmax.f32 %v1069, 1e-12
        %v1071 = vrcp.pop %v1070
        %v1072 = vmul.f32 %v1043, %v1071
        %v1073 = vmul.f32 %v1046, %v1071
        %v1074 = vmul.f32 %v1051, %v1071
        %v1075 = vmul.f32 %v1054, %v1071
        %v1076 = vmul.f32 %v1072, %v1072
        %v1077 = vmul.f32 %v1073, %v1073
        %v1078 = vmul.f32 %v1074, %v1074
        %v1079 = vmul.f32 %v1075, %v1075
        %v1080 = vadd.f32 %v1076, %v1077
        %v1081 = vadd.f32 %v1080, %v1078
        %v1082 = vadd.f32 %v1081, %v1079
        %v1083 = vrot.slane %v1082, 4
        %v1084 = vadd.f32 %v1082, %v1083
        %v1085 = vrot.slane %v1084, 2
        %v1086 = vadd.f32 %v1084, %v1085
        %v1087 = vrot.slane %v1086, 1
        %v1088 = vadd.f32 %v1086, %v1087
        %v1089 = vmax.f32 %v1088, 1e-24
        %v1090 = vrsqrt.pop %v1089
        %v1091 = vmul.f32 %v1072, %v1090
        %v1092 = vmul.f32 %v1073, %v1090
        %v1093 = vmul.f32 %v1074, %v1090
        %v1094 = vmul.f32 %v1075, %v1090
        %1095 = vst [vmem:[%s234] sm:$0xff] %v1091
        %1096 = vst [vmem:[%s234 + $0x8] sm:$0xff] %v1092
        %1097 = vst [vmem:[%s234 + $0x10] sm:$0xff] %v1093
        %1098 = vst [vmem:[%s234 + $0x18] sm:$0xff] %v1094
        %1099 = vst [vmem:[%s241] sm:$0xff] %v970
        %1100 = vst [vmem:[%s241 + $0x8] sm:$0xff] %v971
        %1101 = vst [vmem:[%s241 + $0x10] sm:$0xff] %v972
        %1102 = vst [vmem:[%s241 + $0x18] sm:$0xff] %v973
        %1103 = vst [vmem:[%s241 + $0x20] sm:$0xff] %v974
        %1104 = vst [vmem:[%s241 + $0x28] sm:$0xff] %v975
        %1105 = vst [vmem:[%s241 + $0x30] sm:$0xff] %v976
        %1106 = vst [vmem:[%s241 + $0x38] sm:$0xff] %v977
        %s1107 = sand.u32 %s102, 1
        %s1108 = scalar_lea.sflag [#allocation4], %s1107
        %s1109 = sand.u32 %s102, 1
        %s1110 = smul.addr %s1109, 32
        %s1111 = scalar_lea.vmem [#allocation7], %s1110
        %s1112 = sand.u32 %s128, 1
        %s1113 = scalar_lea.sflag [#allocation9], %s1112
        %s1114 = sand.u32 %s128, 1
        %s1115 = smul.addr %s1114, 64
        %s1116 = scalar_lea.vmem [#allocation8], %s1115
        // Predicated region
        $region41: #{tpu_custom_call.1} parent=31 // pred_check
          %p1117 = pneg %p112
        $region42: #{tpu_custom_call.1} parent=31 // pred_check_branch
          %1119 = sbr.rel (%p1117) target = $region44
        $region43: #{tpu_custom_call.1} parent=31 // pred_region
          %s1121 = ssub.s32 512, 512
          %1122 = vsyncadd %s1108, %s1121
          %s1123 = smul.addr %s26, 4
          %s1124 = smul.addr %s1123, 128
          %s1125 = scalar_lea.hbm %s3, %s1124
          %s1126 = sshll.u32 %s1111, 4
          %s1127 = int_to_ptr.vmem [resolvable:$true] %s1126
          %1132 = dma.vmem_to_hbm [thread:$0]  %s1127, 512, %s1125, %s1108, 128, 128, 8
        $region44: #{tpu_custom_call.1} parent=31 // pred_fallthru
          _
        // Predicated region
        $region45: #{tpu_custom_call.1} parent=31 // pred_check
          %p1133 = pneg %p138
        $region46: #{tpu_custom_call.1} parent=31 // pred_check_branch
          %1135 = sbr.rel (%p1133) target = $region48
        $region47: #{tpu_custom_call.1} parent=31 // pred_region
          %s1137 = ssub.s32 1024, 1024
          %1138 = vsyncadd %s1113, %s1137
          %s1139 = smul.addr %s26, 8
          %s1140 = smul.addr %s1139, 128
          %s1141 = scalar_lea.hbm %s4, %s1140
          %s1142 = sshll.u32 %s1116, 4
          %s1143 = int_to_ptr.vmem [resolvable:$true] %s1142
          %1148 = dma.vmem_to_hbm [thread:$0]  %s1143, 1024, %s1141, %s1113, 128, 128, 8
        $region48: #{tpu_custom_call.1} parent=31 // pred_fallthru
          _
      $region32: #{tpu_custom_call.1} parent=5 // pred_fallthru
        _
      %p1149 = scmp.le.s32.totalorder 2, %s21
      // Predicated region
      $region49: #{tpu_custom_call.1} parent=5 // pred_check
        %p1150 = pneg %p1149
      $region50: #{tpu_custom_call.1} parent=5 // pred_check_branch
        %1152 = sbr.rel (%p1150) target = $region52
      $region51: #{tpu_custom_call.1} parent=5 // pred_region
        %s1153 = ssub.s32 %s21, 2
        // Predicated region
        $region53: #{tpu_custom_call.1} parent=51 // pred_check
          %p1154 = pneg %p118
        $region54: #{tpu_custom_call.1} parent=51 // pred_check_branch
          %1156 = sbr.rel (%p1154) target = $region56
        $region55: #{tpu_custom_call.1} parent=51 // pred_region
          %s1157 = sand.u32 %s103, 1
          %s1158 = scalar_lea.sflag [#allocation4], %s1157
          %s1159 = sand.u32 %s103, 1
          %s1160 = smul.addr %s1159, 32
          %s1161 = scalar_lea.vmem [#allocation7], %s1160
          %1162 = dma.done %s1158, 512
        $region56: #{tpu_custom_call.1} parent=51 // pred_fallthru
          _
        // Predicated region
        $region57: #{tpu_custom_call.1} parent=51 // pred_check
          %p1163 = pneg %p144
        $region58: #{tpu_custom_call.1} parent=51 // pred_check_branch
          %1165 = sbr.rel (%p1163) target = $region60
        $region59: #{tpu_custom_call.1} parent=51 // pred_region
          %s1166 = sand.u32 %s129, 1
          %s1167 = scalar_lea.sflag [#allocation9], %s1166
          %s1168 = sand.u32 %s129, 1
          %s1169 = smul.addr %s1168, 64
          %s1170 = scalar_lea.vmem [#allocation8], %s1169
          %1171 = dma.done %s1167, 1024
        $region60: #{tpu_custom_call.1} parent=51 // pred_fallthru
          _
      $region52: #{tpu_custom_call.1} parent=5 // pred_fallthru
        _
    $region6: #{tpu_custom_call.1} parent=1 // loop_footer
      %s25 = sadd.s32 1, %s21
    $region7: #{tpu_custom_call.1} parent=1 // loop_footer_branch
      %20 = sbr.rel target = $region3
    $region8: #{tpu_custom_call.1} parent=1 // loop_exit
      _
    %1172 = vsyncpa [#allocation3], 1
    %s1173 = scalar_lea.sflag [#allocation3], 1
    %1174 = vsyncpa %s1173, 1
    %1175 = vsyncpa [#allocation6], 1
    %1176 = vsyncpa [#allocation4], 1
    %s1177 = scalar_lea.sflag [#allocation4], 1
    %1178 = vsyncpa %s1177, 1
    %1179 = vsyncpa [#allocation9], 1
    %s1180 = scalar_lea.sflag [#allocation9], 1
    %1181 = vsyncpa %s1180, 1

</llo_original>
